<compile_context>
chip_gen: v6e
topology: v6e:2x2x1
jax: 0.10.0
libtpu: 0.0.40
codegen_flags: <defaults>
</compile_context>

<pallas_src>
import functools

import jax
import jax.numpy as jnp
from jax.experimental import pallas as pl
from jax.experimental.pallas import tpu as pltpu


# ----------------------------------------------------------------------------
# Plain-JAX helpers (glue, exactly mirroring the PyTorch reference functions)
# ----------------------------------------------------------------------------
def silu(x):
    return x * jax.nn.sigmoid(x)


def generate_positional_encodings(history_len, embedding_dim, n=1000.0):
    k = jnp.arange(history_len, dtype=jnp.float32)[:, None]            # [H, 1]
    i = jnp.arange(embedding_dim // 2, dtype=jnp.float32)[None, :]      # [1, D/2]
    denom = jnp.power(jnp.float32(n), 2.0 * i / embedding_dim)
    angles = k / denom                                                   # [H, D/2]
    pe = jnp.zeros((history_len, embedding_dim), dtype=jnp.float32)
    pe = pe.at[:, 0::2].set(jnp.sin(angles))
    pe = pe.at[:, 1::2].set(jnp.cos(angles))
    return pe


def get_timestep_embedding(timesteps, embedding_dim, max_time=1000.0):
    assert timesteps.ndim == 1
    ts = timesteps.astype(jnp.float32) * (1000.0 / max_time)
    half_dim = embedding_dim // 2
    emb = jnp.log(jnp.float32(10000.0)) / (half_dim - 1)
    emb = jnp.exp(jnp.arange(half_dim, dtype=jnp.float32) * -emb)
    emb = ts[:, None] * emb[None, :]
    emb = jnp.concatenate([jnp.sin(emb), jnp.cos(emb)], axis=1)
    if embedding_dim % 2 == 1:
        emb = jnp.concatenate(
            [emb, jnp.zeros((ts.shape[0], 1), jnp.float32)], axis=1)
    return emb


def integrate_encodings(features, indices, encodings, num_edges):
    """features: [N, F]; indices: [B, H]; encodings: [H, E] -> [N, F+E]."""
    batch_size = indices.shape[0]
    enc_rep = jnp.tile(encodings, (batch_size, 1))                       # [B*H, E]
    new_features = jnp.concatenate(
        [features,
         jnp.zeros((features.shape[0], encodings.shape[1]), features.dtype)],
        axis=1)
    batch_offsets = jnp.arange(batch_size, dtype=indices.dtype) * num_edges
    flat_indices = (indices + batch_offsets[:, None]).reshape(-1)        # [B*H]
    nf = features.shape[1]
    new_features = new_features.at[flat_indices, nf:].set(enc_rep)
    return new_features


def _round_up(x, m):
    return (x + m - 1) // m * m


# ----------------------------------------------------------------------------
# Pallas kernel: the per-edge MLP stack with the input concat folded in
#   h   = relu(x @ W1x + t_emb @ W1t + b1)          (first lin_layer)
#   h   = relu(h @ Wi + bi)  for the remaining lin_layers
#   out = h @ W_tail + b_tail   (host-fused future_decoder @ adjust_to_class)
# ----------------------------------------------------------------------------
def _edge_mlp_kernel(xf_ref, te_ref, *refs, num_hidden_relu):
    out_ref = refs[-1]
    p = refs[:-1]

    w1x, w1t, b1 = p[0][...], p[1][...], p[2][...]
    # concat([x, t_emb]) @ [W1x; W1t] == x @ W1x + t_emb @ W1t  (f32 accumulate)
    h = jnp.dot(xf_ref[...], w1x, preferred_element_type=jnp.float32)
    h = h + jnp.dot(te_ref[...], w1t, preferred_element_type=jnp.float32)
    h = jnp.maximum(h + b1, 0.0)

    idx = 3
    for _ in range(num_hidden_relu):
        w, b = p[idx][...], p[idx + 1][...]
        idx += 2
        h = jnp.dot(h.astype(w.dtype), w, preferred_element_type=jnp.float32) + b
        h = jnp.maximum(h, 0.0)

    w, b = p[idx][...], p[idx + 1][...]
    out_ref[...] = (jnp.dot(h.astype(w.dtype), w,
                            preferred_element_type=jnp.float32) + b
                    ).astype(out_ref.dtype)


def edge_mlp_pallas(x_feat, t_emb, layer_params, num_classes, *,
                    compute_dtype=jnp.bfloat16, max_tile_m=2048):
    """x_feat: [N, feat_dim]; t_emb: [N, time_dim] (already repeated per edge).

    layer_params: list of (w[in,out], b[out]) in apply order.  The last two
    entries are future_decoder and adjust_to_class_shape (no ReLU, fused on
    the host); everything before them is a ReLU Linear layer.
    """
    N, feat_dim = x_feat.shape
    td = t_emb.shape[1]
    f32 = jnp.float32

    # --- host-side algebraic fusion of the two activation-free tail layers ---
    relu_layers = layer_params[:-2]
    (w_fd, b_fd), (w_adj, b_adj) = layer_params[-2], layer_params[-1]
    w_tail = w_fd.astype(f32) @ w_adj.astype(f32)                        # [hc, nc]
    b_tail = b_fd.astype(f32) @ w_adj.astype(f32) + b_adj.astype(f32)    # [nc]

    # --- split first-layer weight so the concat is folded into the kernel ---
    w1, b1 = relu_layers[0]
    w1 = w1.astype(f32)
    w1x, w1t = w1[:feat_dim], w1[feat_dim:]                              # [F,hc],[T,hc]

    # bf16 operands, f32 biases (added after the f32-accumulated matmul)
    flat = [w1x.astype(compute_dtype), w1t.astype(compute_dtype),
            b1.reshape(1, -1).astype(f32)]
    for (w, b) in relu_layers[1:]:
        flat.append(w.astype(compute_dtype))
        flat.append(b.reshape(1, -1).astype(f32))
    flat.append(w_tail.astype(compute_dtype))
    flat.append(b_tail.reshape(1, -1).astype(f32))
    num_hidden_relu = len(relu_layers) - 1

    x_feat = x_feat.astype(compute_dtype)
    t_emb = t_emb.astype(compute_dtype)

    # --- row tiling: one tile for small N; big 16-aligned tiles (and at least
    #     two of them, so both v7x TensorCores get work) for large N ---------
    row_align = 16  # bf16 sublane packing; also legal for f32
    if N <= 1024:
        tile_m = _round_up(N, row_align)
    else:
        tile_m = min(max_tile_m, _round_up(-(-N // 2), row_align))
    n_pad = _round_up(N, tile_m)
    if n_pad != N:
        x_feat = jnp.pad(x_feat, ((0, n_pad - N), (0, 0)))
        t_emb = jnp.pad(t_emb, ((0, n_pad - N), (0, 0)))
    grid = (n_pad // tile_m,)

    in_specs = [pl.BlockSpec((tile_m, feat_dim), lambda i: (i, 0)),
                pl.BlockSpec((tile_m, td), lambda i: (i, 0))]
    for arr in flat:
        # small constant weights/biases: full (untiled) blocks, constant index
        in_specs.append(pl.BlockSpec(arr.shape, lambda i: (0, 0)))

    # Narrow output: block last dim == full array dim, so only num_classes
    # lanes are written back (no 128-lane padded slab, no class-axis slice).
    out_spec = pl.BlockSpec((tile_m, num_classes), lambda i: (i, 0))

    dbytes = jnp.dtype(compute_dtype).itemsize
    hc = int(w1x.shape[1])
    flops = 2 * n_pad * (feat_dim * hc + td * hc
                         + sum(int(w.shape[0]) * int(w.shape[1])
                               for w in flat[3::2]))
    bytes_accessed = (n_pad * (feat_dim + td) * dbytes
                      + n_pad * num_classes * 4
                      + sum(int(a.size) * jnp.dtype(a.dtype).itemsize
                            for a in flat))

    kernel = functools.partial(_edge_mlp_kernel,
                               num_hidden_relu=num_hidden_relu)
    out = pl.pallas_call(
        kernel,
        out_shape=jax.ShapeDtypeStruct((n_pad, num_classes), jnp.float32),
        grid=grid,
        in_specs=in_specs,
        out_specs=out_spec,
        compiler_params=pltpu.CompilerParams(
            dimension_semantics=("parallel",),
            # let XLA fuse the producers of the two row-tiled operands
            # (pos-encoding scatter / repeat_interleave / pad) into the call
            allow_input_fusion=[True, True] + [False] * len(flat)),
        cost_estimate=pl.CostEstimate(
            flops=flops, transcendentals=0, bytes_accessed=bytes_accessed),
    )(x_feat, t_emb, *flat)
    if n_pad != N:
        out = out[:N]
    return out


# ----------------------------------------------------------------------------
# Full forward pass (mirrors Edge_Encoder_MLP.forward)
# ----------------------------------------------------------------------------
def edge_encoder_mlp_forward(x, indices, t, params, cfg,
                             compute_dtype=jnp.bfloat16):
    num_edges = cfg["num_edges"]
    batch_size = x.shape[0] // num_edges

    if "pos_encoding" in cfg["edge_features"]:
        pe = generate_positional_encodings(cfg["history_len"],
                                           cfg["pos_encoding_dim"])
        enc = silu(pe @ params["pos_w0"] + params["pos_b0"])
        enc = silu(enc @ params["pos_w1"] + params["pos_b1"])
        x = integrate_encodings(x, indices, enc, num_edges)

    t_emb = get_timestep_embedding(t, cfg["time_embedding_dim"],
                                   max_time=cfg["num_timesteps"])
    t_emb = silu(t_emb @ params["time_w0"] + params["time_b0"])
    t_emb = silu(t_emb @ params["time_w1"] + params["time_b1"])
    t_emb = jnp.repeat(t_emb, num_edges, axis=0)                # repeat_interleave

    logits = edge_mlp_pallas(x, t_emb, params["mlp"], cfg["num_classes"],
                             compute_dtype=compute_dtype)
    return logits.reshape(batch_size, num_edges, -1)


def edge_encoder_mlp_reference(x, indices, t, params, cfg):
    """Pure-JAX f32 reference (same math, unfused tail, host concat)."""
    num_edges = cfg["num_edges"]
    batch_size = x.shape[0] // num_edges
    if "pos_encoding" in cfg["edge_features"]:
        pe = generate_positional_encodings(cfg["history_len"],
                                           cfg["pos_encoding_dim"])
        enc = silu(pe @ params["pos_w0"] + params["pos_b0"])
        enc = silu(enc @ params["pos_w1"] + params["pos_b1"])
        x = integrate_encodings(x, indices, enc, num_edges)
    t_emb = get_timestep_embedding(t, cfg["time_embedding_dim"],
                                   max_time=cfg["num_timesteps"])
    t_emb = silu(t_emb @ params["time_w0"] + params["time_b0"])
    t_emb = silu(t_emb @ params["time_w1"] + params["time_b1"])
    t_emb = jnp.repeat(t_emb, num_edges, axis=0)
    h = jnp.concatenate([x, t_emb], axis=1)
    mlp = params["mlp"]
    for (w, b) in mlp[:-2]:
        h = jnp.maximum(h @ w + b, 0.0)
    h = h @ mlp[-2][0] + mlp[-2][1]
    h = h @ mlp[-1][0] + mlp[-1][1]
    return h.reshape(batch_size, num_edges, -1)


# ----------------------------------------------------------------------------
# Deterministic parameter construction
# ----------------------------------------------------------------------------
def make_params(key, cfg):
    td = cfg["time_embedding_dim"]
    pd = cfg["pos_encoding_dim"]
    hc = cfg["hidden_channels"]
    nc = cfg["num_classes"]
    nef = cfg["num_edge_features"]
    nl = cfg["num_layers"]
    use_pos = "pos_encoding" in cfg["edge_features"]
    in_dim = nef + td + (pd if use_pos else 0)

    def lin(k, fan_in, fan_out):
        kw, kb = jax.random.split(k)
        scale = 1.0 / jnp.sqrt(jnp.float32(fan_in))
        w = jax.random.uniform(kw, (fan_in, fan_out), jnp.float32, -scale, scale)
        b = jax.random.uniform(kb, (fan_out,), jnp.float32, -scale, scale)
        return w, b

    keys = jax.random.split(key, 8 + nl + 2)
    params = {}
    params["time_w0"], params["time_b0"] = lin(keys[0], td, td)
    params["time_w1"], params["time_b1"] = lin(keys[1], td, td)
    if use_pos:
        params["pos_w0"], params["pos_b0"] = lin(keys[2], pd, pd)
        params["pos_w1"], params["pos_b1"] = lin(keys[3], pd, pd)

    mlp = [lin(keys[4], in_dim, hc)]
    for i in range(1, nl):
        mlp.append(lin(keys[4 + i], hc, hc))
    mlp.append(lin(keys[4 + nl], hc, hc))        # future_decoder
    mlp.append(lin(keys[5 + nl], hc, nc))        # adjust_to_class_shape
    params["mlp"] = mlp
    return params


# ----------------------------------------------------------------------------
# Main
# ----------------------------------------------------------------------------
if __name__ == "__main__":
    cfg = dict(
        num_edges=64,
        num_edge_features=4,
        history_len=8,
        future_len=4,
        num_classes=4,
        hidden_channels=32,
        time_embedding_dim=16,
        pos_encoding_dim=16,
        num_layers=2,
        num_timesteps=100,
        edge_features=["one_hot_edges", "pos_encoding"],
    )
    batch_size = 2
    N = batch_size * cfg["num_edges"]

    root = jax.random.PRNGKey(0)
    k_x, k_idx, k_t, k_p = jax.random.split(root, 4)

    x = jax.random.normal(k_x, (N, cfg["num_edge_features"]), jnp.float32)
    # per-batch distinct edge indices for the history trajectory
    idx_keys = jax.random.split(k_idx, batch_size)
    indices = jnp.stack([
        jax.random.permutation(idx_keys[b], cfg["num_edges"])[: cfg["history_len"]]
        for b in range(batch_size)
    ]).astype(jnp.int32)
    t = jax.random.randint(k_t, (batch_size,), 0, cfg["num_timesteps"],
                           dtype=jnp.int32)

    params = make_params(k_p, cfg)

    fwd_bf16 = jax.jit(
        lambda x_, i_, t_, p_: edge_encoder_mlp_forward(x_, i_, t_, p_, cfg,
                                                        jnp.bfloat16))
    fwd_f32 = jax.jit(
        lambda x_, i_, t_, p_: edge_encoder_mlp_forward(x_, i_, t_, p_, cfg,
                                                        jnp.float32))

    logits = jax.block_until_ready(fwd_bf16(x, indices, t, params))
    assert logits.shape == (batch_size, cfg["num_edges"], cfg["num_classes"])

    ref = jax.block_until_ready(
        edge_encoder_mlp_reference(x, indices, t, params, cfg))

    # bf16 operands / f32 accumulation: loosened numeric tolerance
    assert jnp.allclose(logits, ref, rtol=2e-2, atol=2e-2), \
        "bf16 kernel mismatch vs reference"

    # f32 compute path matches the reference tightly
    logits_f32 = jax.block_until_ready(fwd_f32(x, indices, t, params))
    assert jnp.allclose(logits_f32, ref, rtol=1e-3, atol=1e-3), \
        "f32 kernel mismatch vs reference"

    print("KERNEL_OK")
</pallas_src>

<mosaic_0001>
module attributes {stable_mosaic.version = 11 : i64} {
  func.func @_edge_mlp_kernel(%arg0: i32, %arg1: memref<128x20xbf16, #tpu.memory_space<vmem>>, %arg2: memref<128x16xbf16, #tpu.memory_space<vmem>>, %arg3: memref<20x32xbf16, #tpu.memory_space<vmem>>, %arg4: memref<16x32xbf16, #tpu.memory_space<vmem>>, %arg5: memref<1x32xf32, #tpu.memory_space<vmem>>, %arg6: memref<32x32xbf16, #tpu.memory_space<vmem>>, %arg7: memref<1x32xf32, #tpu.memory_space<vmem>>, %arg8: memref<32x4xbf16, #tpu.memory_space<vmem>>, %arg9: memref<1x4xf32, #tpu.memory_space<vmem>>, %arg10: memref<128x4xf32, #tpu.memory_space<vmem>>) attributes {dimension_semantics = [#tpu.dimension_semantics<parallel>], iteration_bounds = array<i64: 1>, scalar_prefetch = 0 : i64, scratch_operands = 0 : i64, tpu.core_type = #tpu.core_type<tc>, window_params = [{transform_indices = @transform_0, window_bounds = array<i64: 128, 20>}, {transform_indices = @transform_1, window_bounds = array<i64: 128, 16>}, {pipeline_mode = #tpu.pipeline_mode<synchronous>, transform_indices = @transform_2, window_bounds = array<i64: 20, 32>}, {pipeline_mode = #tpu.pipeline_mode<synchronous>, transform_indices = @transform_3, window_bounds = array<i64: 16, 32>}, {pipeline_mode = #tpu.pipeline_mode<synchronous>, transform_indices = @transform_4, window_bounds = array<i64: 1, 32>}, {pipeline_mode = #tpu.pipeline_mode<synchronous>, transform_indices = @transform_5, window_bounds = array<i64: 32, 32>}, {pipeline_mode = #tpu.pipeline_mode<synchronous>, transform_indices = @transform_6, window_bounds = array<i64: 1, 32>}, {pipeline_mode = #tpu.pipeline_mode<synchronous>, transform_indices = @transform_7, window_bounds = array<i64: 32, 4>}, {pipeline_mode = #tpu.pipeline_mode<synchronous>, transform_indices = @transform_8, window_bounds = array<i64: 1, 4>}, {transform_indices = @transform_9, window_bounds = array<i64: 128, 4>}]} {
    %c0 = arith.constant 0 : index
    %c0_0 = arith.constant 0 : index
    %0 = vector.load %arg3[%c0, %c0_0] : memref<20x32xbf16, #tpu.memory_space<vmem>>, vector<20x32xbf16>
    %c0_1 = arith.constant 0 : index
    %c0_2 = arith.constant 0 : index
    %1 = vector.load %arg4[%c0_1, %c0_2] : memref<16x32xbf16, #tpu.memory_space<vmem>>, vector<16x32xbf16>
    %c0_3 = arith.constant 0 : index
    %c0_4 = arith.constant 0 : index
    %2 = vector.load %arg5[%c0_3, %c0_4] : memref<1x32xf32, #tpu.memory_space<vmem>>, vector<1x32xf32>
    %c0_5 = arith.constant 0 : index
    %c0_6 = arith.constant 0 : index
    %3 = vector.load %arg1[%c0_5, %c0_6] : memref<128x20xbf16, #tpu.memory_space<vmem>>, vector<128x20xbf16>
    %cst = arith.constant dense<0.000000e+00> : vector<128x32xf32>
    %4 = tpu.matmul %3, %0, %cst {dimension_numbers = #tpu.dot_dimension_numbers<[1], [0], [0], [1], [0, 0, 1, 1], [], []>} : vector<128x20xbf16>, vector<20x32xbf16>, vector<128x32xf32> -> vector<128x32xf32>
    %c0_7 = arith.constant 0 : index
    %c0_8 = arith.constant 0 : index
    %5 = vector.load %arg2[%c0_7, %c0_8] : memref<128x16xbf16, #tpu.memory_space<vmem>>, vector<128x16xbf16>
    %cst_9 = arith.constant dense<0.000000e+00> : vector<128x32xf32>
    %6 = tpu.matmul %5, %1, %cst_9 {dimension_numbers = #tpu.dot_dimension_numbers<[1], [0], [0], [1], [0, 0, 1, 1], [], []>} : vector<128x16xbf16>, vector<16x32xbf16>, vector<128x32xf32> -> vector<128x32xf32>
    %7 = arith.addf %4, %6 : vector<128x32xf32>
    %8 = vector.broadcast %2 : vector<1x32xf32> to vector<128x32xf32>
    %9 = arith.addf %7, %8 : vector<128x32xf32>
    %cst_10 = arith.constant 0.000000e+00 : f32
    %10 = vector.broadcast %cst_10 : f32 to vector<128x32xf32>
    %11 = arith.maximumf %9, %10 : vector<128x32xf32>
    %c0_11 = arith.constant 0 : index
    %c0_12 = arith.constant 0 : index
    %12 = vector.load %arg6[%c0_11, %c0_12] : memref<32x32xbf16, #tpu.memory_space<vmem>>, vector<32x32xbf16>
    %c0_13 = arith.constant 0 : index
    %c0_14 = arith.constant 0 : index
    %13 = vector.load %arg7[%c0_13, %c0_14] : memref<1x32xf32, #tpu.memory_space<vmem>>, vector<1x32xf32>
    %14 = arith.truncf %11 : vector<128x32xf32> to vector<128x32xbf16>
    %cst_15 = arith.constant dense<0.000000e+00> : vector<128x32xf32>
    %15 = tpu.matmul %14, %12, %cst_15 {dimension_numbers = #tpu.dot_dimension_numbers<[1], [0], [0], [1], [0, 0, 1, 1], [], []>} : vector<128x32xbf16>, vector<32x32xbf16>, vector<128x32xf32> -> vector<128x32xf32>
    %16 = vector.broadcast %13 : vector<1x32xf32> to vector<128x32xf32>
    %17 = arith.addf %15, %16 : vector<128x32xf32>
    %cst_16 = arith.constant 0.000000e+00 : f32
    %18 = vector.broadcast %cst_16 : f32 to vector<128x32xf32>
    %19 = arith.maximumf %17, %18 : vector<128x32xf32>
    %c0_17 = arith.constant 0 : index
    %c0_18 = arith.constant 0 : index
    %20 = vector.load %arg8[%c0_17, %c0_18] : memref<32x4xbf16, #tpu.memory_space<vmem>>, vector<32x4xbf16>
    %c0_19 = arith.constant 0 : index
    %c0_20 = arith.constant 0 : index
    %21 = vector.load %arg9[%c0_19, %c0_20] : memref<1x4xf32, #tpu.memory_space<vmem>>, vector<1x4xf32>
    %22 = arith.truncf %19 : vector<128x32xf32> to vector<128x32xbf16>
    %cst_21 = arith.constant dense<0.000000e+00> : vector<128x4xf32>
    %23 = tpu.matmul %22, %20, %cst_21 {dimension_numbers = #tpu.dot_dimension_numbers<[1], [0], [0], [1], [0, 0, 1, 1], [], []>} : vector<128x32xbf16>, vector<32x4xbf16>, vector<128x4xf32> -> vector<128x4xf32>
    %24 = vector.broadcast %21 : vector<1x4xf32> to vector<128x4xf32>
    %25 = arith.addf %23, %24 : vector<128x4xf32>
    %c0_22 = arith.constant 0 : index
    %c0_23 = arith.constant 0 : index
    %26 = vector.load %arg10[%c0_22, %c0_23] : memref<128x4xf32, #tpu.memory_space<vmem>>, vector<128x4xf32>
    tpu.vector_store %arg10[%c0_22, %c0_23], %25 {strides = array<i32>} : memref<128x4xf32, #tpu.memory_space<vmem>>, vector<128x4xf32>,
    return
  }
  func.func @transform_0(%arg0: i32) -> (i32, i32) {
    %c0_i32 = arith.constant 0 : i32
    %c0_i32_0 = arith.constant 0 : i32
    return %arg0, %c0_i32 : i32, i32
  }
  func.func @transform_1(%arg0: i32) -> (i32, i32) {
    %c0_i32 = arith.constant 0 : i32
    %c0_i32_0 = arith.constant 0 : i32
    return %arg0, %c0_i32 : i32, i32
  }
  func.func @transform_2(%arg0: i32) -> (i32, i32) {
    %c0_i32 = arith.constant 0 : i32
    %c0_i32_0 = arith.constant 0 : i32
    %c0_i32_1 = arith.constant 0 : i32
    return %c0_i32, %c0_i32_0 : i32, i32
  }
  func.func @transform_3(%arg0: i32) -> (i32, i32) {
    %c0_i32 = arith.constant 0 : i32
    %c0_i32_0 = arith.constant 0 : i32
    %c0_i32_1 = arith.constant 0 : i32
    return %c0_i32, %c0_i32_0 : i32, i32
  }
  func.func @transform_4(%arg0: i32) -> (i32, i32) {
    %c0_i32 = arith.constant 0 : i32
    %c0_i32_0 = arith.constant 0 : i32
    %c0_i32_1 = arith.constant 0 : i32
    return %c0_i32, %c0_i32_0 : i32, i32
  }
  func.func @transform_5(%arg0: i32) -> (i32, i32) {
    %c0_i32 = arith.constant 0 : i32
    %c0_i32_0 = arith.constant 0 : i32
    %c0_i32_1 = arith.constant 0 : i32
    return %c0_i32, %c0_i32_0 : i32, i32
  }
  func.func @transform_6(%arg0: i32) -> (i32, i32) {
    %c0_i32 = arith.constant 0 : i32
    %c0_i32_0 = arith.constant 0 : i32
    %c0_i32_1 = arith.constant 0 : i32
    return %c0_i32, %c0_i32_0 : i32, i32
  }
  func.func @transform_7(%arg0: i32) -> (i32, i32) {
    %c0_i32 = arith.constant 0 : i32
    %c0_i32_0 = arith.constant 0 : i32
    %c0_i32_1 = arith.constant 0 : i32
    return %c0_i32, %c0_i32_0 : i32, i32
  }
  func.func @transform_8(%arg0: i32) -> (i32, i32) {
    %c0_i32 = arith.constant 0 : i32
    %c0_i32_0 = arith.constant 0 : i32
    %c0_i32_1 = arith.constant 0 : i32
    return %c0_i32, %c0_i32_0 : i32, i32
  }
  func.func @transform_9(%arg0: i32) -> (i32, i32) {
    %c0_i32 = arith.constant 0 : i32
    %c0_i32_0 = arith.constant 0 : i32
    return %arg0, %c0_i32 : i32, i32
  }
}

</mosaic_0001>

<llo_original>
// kernel: _lambda_.1
$region0: #{_lambda_.1}
  #allocation0 [shape = 'u32[]', space=smem, size = 0x4, offset = 0x4, fixed_abs, tag = 'smem constant byte address 0x4 - core index']
  #allocation1 [shape = 'u32[144,128]{1,0:T(1,128)}', space=vmem, size = 0x12000, scoped, tag = 'internal scratch']
  %s0 = inlined_call_operand.vmem [shape: bf16[128,20], index: 0, kind: input, shape index: {}]
  %s1 = inlined_call_operand.vmem [shape: bf16[128,16], index: 1, kind: input, shape index: {}]
  %s2 = inlined_call_operand.vmem [shape: bf16[20,32], index: 2, kind: input, shape index: {}]
  %s3 = inlined_call_operand.vmem [shape: bf16[16,32], index: 3, kind: input, shape index: {}]
  %s4 = inlined_call_operand.vmem [shape: f32[1,32], index: 4, kind: input, shape index: {}]
  %s5 = inlined_call_operand.vmem [shape: bf16[32,32], index: 5, kind: input, shape index: {}]
  %s6 = inlined_call_operand.vmem [shape: f32[1,32], index: 6, kind: input, shape index: {}]
  %s7 = inlined_call_operand.vmem [shape: bf16[32,4], index: 7, kind: input, shape index: {}]
  %s8 = inlined_call_operand.vmem [shape: f32[1,4], index: 8, kind: input, shape index: {}]
  %s9 = inlined_call_operand.vmem [shape: f32[128,4], index: 9, kind: output, shape index: {}]
  %s10 = sld [smem:[#allocation0]]
  $region46: #{_lambda_.1} parent=0
    _
  %s12 = ssub.s32 1, %s10
  %s13 = scalar_select 0, %s12, %s10
  // Predicated region
  $region2: #{_lambda_.1} parent=0 // pred_check
    _
  $region3: #{_lambda_.1} parent=0 // pred_check_branch
    %15 = sbr.rel (0) target = $region5
  $region4: #{_lambda_.1} parent=0 // pred_region
    _
  $region5: #{_lambda_.1} parent=0 // pred_fallthru
    _
  // Predicated region
  $region6: #{_lambda_.1} parent=0 // pred_check
    _
  $region7: #{_lambda_.1} parent=0 // pred_check_branch
    %17 = sbr.rel (0) target = $region9
  $region8: #{_lambda_.1} parent=0 // pred_region
    _
  $region9: #{_lambda_.1} parent=0 // pred_fallthru
    _
  // Predicated region
  $region10: #{_lambda_.1} parent=0 // pred_check
    _
  $region11: #{_lambda_.1} parent=0 // pred_check_branch
    %19 = sbr.rel (0) target = $region13
  $region12: #{_lambda_.1} parent=0 // pred_region
    _
  $region13: #{_lambda_.1} parent=0 // pred_fallthru
    _
  // Predicated region
  $region14: #{_lambda_.1} parent=0 // pred_check
    _
  $region15: #{_lambda_.1} parent=0 // pred_check_branch
    %21 = sbr.rel (0) target = $region17
  $region16: #{_lambda_.1} parent=0 // pred_region
    _
  $region17: #{_lambda_.1} parent=0 // pred_fallthru
    _
  // Predicated region
  $region18: #{_lambda_.1} parent=0 // pred_check
    _
  $region19: #{_lambda_.1} parent=0 // pred_check_branch
    %23 = sbr.rel (0) target = $region21
  $region20: #{_lambda_.1} parent=0 // pred_region
    _
  $region21: #{_lambda_.1} parent=0 // pred_fallthru
    _
  // Predicated region
  $region22: #{_lambda_.1} parent=0 // pred_check
    _
  $region23: #{_lambda_.1} parent=0 // pred_check_branch
    %25 = sbr.rel (0) target = $region25
  $region24: #{_lambda_.1} parent=0 // pred_region
    _
  $region25: #{_lambda_.1} parent=0 // pred_fallthru
    _
  // Predicated region
  $region26: #{_lambda_.1} parent=0 // pred_check
    _
  $region27: #{_lambda_.1} parent=0 // pred_check_branch
    %27 = sbr.rel (0) target = $region29
  $region28: #{_lambda_.1} parent=0 // pred_region
    _
  $region29: #{_lambda_.1} parent=0 // pred_fallthru
    _
  // Predicated region
  $region30: #{_lambda_.1} parent=0 // pred_check
    _
  $region31: #{_lambda_.1} parent=0 // pred_check_branch
    %29 = sbr.rel (0) target = $region33
  $region32: #{_lambda_.1} parent=0 // pred_region
    _
  $region33: #{_lambda_.1} parent=0 // pred_fallthru
    _
  // Predicated region
  $region34: #{_lambda_.1} parent=0 // pred_check
    _
  $region35: #{_lambda_.1} parent=0 // pred_check_branch
    %31 = sbr.rel (0) target = $region37
  $region36: #{_lambda_.1} parent=0 // pred_region
    _
  $region37: #{_lambda_.1} parent=0 // pred_fallthru
    _
  %v33 = vld [vmem:[%s2] sm:$0xf]
  %v34 = vld [vmem:[%s2 + $0x4] sm:$0xf]
  %v35 = vld [vmem:[%s2 + $0x8] sm:$0x3]
  %v36 = vld [vmem:[%s3] sm:$0xf]
  %v37 = vld [vmem:[%s3 + $0x4] sm:$0xf]
  %v38 = vld [vmem:[%s4] sm:$0x1]
  %v39 = vld [vmem:[%s0] sm:$0xf]
  %v40 = vld [vmem:[%s0 + $0x4] sm:$0xf]
  %v41 = vld [vmem:[%s0 + $0x8] sm:$0xf]
  %v42 = vld [vmem:[%s0 + $0xc] sm:$0xf]
  %v43 = vld [vmem:[%s0 + $0x10] sm:$0xf]
  %v44 = vld [vmem:[%s0 + $0x14] sm:$0xf]
  %v45 = vld [vmem:[%s0 + $0x18] sm:$0xf]
  %v46 = vld [vmem:[%s0 + $0x1c] sm:$0xf]
  %v47 = vld [vmem:[%s0 + $0x20] sm:$0xf]
  %v48 = vld [vmem:[%s0 + $0x24] sm:$0xf]
  %v49 = vld [vmem:[%s0 + $0x28] sm:$0xf]
  %v50 = vld [vmem:[%s0 + $0x2c] sm:$0xf]
  %v51 = vld [vmem:[%s0 + $0x30] sm:$0xf]
  %v52 = vld [vmem:[%s0 + $0x34] sm:$0xf]
  %v53 = vld [vmem:[%s0 + $0x38] sm:$0xf]
  %v54 = vld [vmem:[%s0 + $0x3c] sm:$0xf]
  %v55 = vld [vmem:[%s1] sm:$0xf]
  %v56 = vld [vmem:[%s1 + $0x4] sm:$0xf]
  %v57 = vld [vmem:[%s1 + $0x8] sm:$0xf]
  %v58 = vld [vmem:[%s1 + $0xc] sm:$0xf]
  %v59 = vld [vmem:[%s1 + $0x10] sm:$0xf]
  %v60 = vld [vmem:[%s1 + $0x14] sm:$0xf]
  %v61 = vld [vmem:[%s1 + $0x18] sm:$0xf]
  %v62 = vld [vmem:[%s1 + $0x1c] sm:$0xf]
  %v63 = vld [vmem:[%s1 + $0x20] sm:$0xf]
  %v64 = vld [vmem:[%s1 + $0x24] sm:$0xf]
  %v65 = vld [vmem:[%s1 + $0x28] sm:$0xf]
  %v66 = vld [vmem:[%s1 + $0x2c] sm:$0xf]
  %v67 = vld [vmem:[%s1 + $0x30] sm:$0xf]
  %v68 = vld [vmem:[%s1 + $0x34] sm:$0xf]
  %v69 = vld [vmem:[%s1 + $0x38] sm:$0xf]
  %v70 = vld [vmem:[%s1 + $0x3c] sm:$0xf]
  %v87 = vunpack.c.l.b16 %v55
  %v88 = vunpack.c.l.b16 %v56
  %v89 = vunpack.c.l.b16 %v57
  %v90 = vunpack.c.l.b16 %v58
  %v91 = vunpack.c.l.b16 %v59
  %v92 = vunpack.c.l.b16 %v60
  %v93 = vunpack.c.l.b16 %v61
  %v94 = vunpack.c.l.b16 %v62
  %v95 = vunpack.c.l.b16 %v63
  %v96 = vunpack.c.l.b16 %v64
  %v97 = vunpack.c.l.b16 %v65
  %v98 = vunpack.c.l.b16 %v66
  %v99 = vunpack.c.l.b16 %v67
  %v100 = vunpack.c.l.b16 %v68
  %v101 = vunpack.c.l.b16 %v69
  %v102 = vunpack.c.l.b16 %v70
  %v103 = vpack.c.b16 %v88, %v87
  %v104 = vpack.c.b16 %v90, %v89
  %v105 = vpack.c.b16 %v92, %v91
  %v106 = vpack.c.b16 %v94, %v93
  %v107 = vpack.c.b16 %v96, %v95
  %v108 = vpack.c.b16 %v98, %v97
  %v109 = vpack.c.b16 %v100, %v99
  %v110 = vpack.c.b16 %v102, %v101
  %v113 = vunpack.c.l.b16 %v36
  %v114 = vunpack.c.l.b16 %v37
  %v115 = vpack.c.b16 %v114, %v113
  %vm117 = vcmask 130048
  %v119 = vsel %vm117, %v103, 0
  %v122 = vsel %vm117, %v104, 0
  %v125 = vsel %vm117, %v105, 0
  %v128 = vsel %vm117, %v106, 0
  %v131 = vsel %vm117, %v107, 0
  %v134 = vsel %vm117, %v108, 0
  %v137 = vsel %vm117, %v109, 0
  %v140 = vsel %vm117, %v110, 0
  %142 = vmatprep.subr.bf16.mxu0 0
  %143 = vmatpush1.bf16.msra.mxu0 0
  %144 = vmatprep.subr.bf16.mxu0 0
  %145 = vmatpush1.bf16.msra.mxu0 0
  %146 = vmatprep.subr.bf16.mxu0 0
  %147 = vmatpush1.bf16.msra.mxu0 0
  %148 = vmatprep.subr.bf16.mxu0 0
  %149 = vmatpush1.bf16.msra.mxu0 0
  %150 = vmatprep.subr.bf16.mxu0 0
  %151 = vmatpush1.bf16.msra.mxu0 0
  %152 = vmatprep.subr.bf16.mxu0 0
  %153 = vmatpush1.bf16.msra.mxu0 0
  %154 = vmatprep.subr.bf16.mxu0 0
  %155 = vmatpush1.bf16.msra.mxu0 0
  %156 = vmatprep.subr.bf16.mxu0 0
  %157 = vmatpush1.bf16.msra.mxu0 %v115
  %158 = vmatprep.subr.bf16.mxu0 0
  %159 = vmatpush2.bf16.msra.mxu0 0
  %160 = vmatprep.subr.bf16.mxu0 0
  %161 = vmatpush2.bf16.msra.mxu0 0
  %162 = vmatprep.subr.bf16.mxu0 0
  %163 = vmatpush2.bf16.msra.mxu0 0
  %164 = vmatprep.subr.bf16.mxu0 0
  %165 = vmatpush2.bf16.msra.mxu0 0
  %166 = vmatprep.subr.bf16.mxu0 0
  %167 = vmatpush2.bf16.msra.mxu0 0
  %168 = vmatprep.subr.bf16.mxu0 0
  %169 = vmatpush2.bf16.msra.mxu0 0
  %170 = vmatprep.subr.bf16.mxu0 0
  %171 = vmatpush2.bf16.msra.mxu0 0
  %172 = vmatprep.subr.bf16.mxu0 0
  %173 = vmatpush2.bf16.msra.mxu0 0
  %174 = vmatprep.mubr.bf16.mxu0 0
  %175 = vmatmul.mubr.bf16.gmra.mxu0 %v119
  %v176 = vpop.f32.mrf.mxu0
  %v177 = vadd.f32 0.0, %v176
  %v178 = vpop.f32.mrf.mxu0
  %v179 = vpop.f32.mrf.mxu0
  %v180 = vadd.f32 0.0, %v179
  %v181 = vpop.f32.mrf.mxu0
  %182 = vmatprep.mubr.bf16.mxu0 0
  %183 = vmatmul.mubr.bf16.gmra.mxu0 %v122
  %v184 = vpop.f32.mrf.mxu0
  %v185 = vadd.f32 0.0, %v184
  %v186 = vpop.f32.mrf.mxu0
  %v187 = vpop.f32.mrf.mxu0
  %v188 = vadd.f32 0.0, %v187
  %v189 = vpop.f32.mrf.mxu0
  %190 = vmatprep.mubr.bf16.mxu0 0
  %191 = vmatmul.mubr.bf16.gmra.mxu0 %v125
  %v192 = vpop.f32.mrf.mxu0
  %v193 = vadd.f32 0.0, %v192
  %v194 = vpop.f32.mrf.mxu0
  %v195 = vpop.f32.mrf.mxu0
  %v196 = vadd.f32 0.0, %v195
  %v197 = vpop.f32.mrf.mxu0
  %198 = vmatprep.mubr.bf16.mxu0 0
  %199 = vmatmul.mubr.bf16.gmra.mxu0 %v128
  %v200 = vpop.f32.mrf.mxu0
  %v201 = vadd.f32 0.0, %v200
  %v202 = vpop.f32.mrf.mxu0
  %v203 = vpop.f32.mrf.mxu0
  %v204 = vadd.f32 0.0, %v203
  %v205 = vpop.f32.mrf.mxu0
  %206 = vmatprep.mubr.bf16.mxu0 0
  %207 = vmatmul.mubr.bf16.gmra.mxu0 %v131
  %v208 = vpop.f32.mrf.mxu0
  %v209 = vadd.f32 0.0, %v208
  %v210 = vpop.f32.mrf.mxu0
  %v211 = vpop.f32.mrf.mxu0
  %v212 = vadd.f32 0.0, %v211
  %v213 = vpop.f32.mrf.mxu0
  %214 = vmatprep.mubr.bf16.mxu0 0
  %215 = vmatmul.mubr.bf16.gmra.mxu0 %v134
  %v216 = vpop.f32.mrf.mxu0
  %v217 = vadd.f32 0.0, %v216
  %v218 = vpop.f32.mrf.mxu0
  %v219 = vpop.f32.mrf.mxu0
  %v220 = vadd.f32 0.0, %v219
  %v221 = vpop.f32.mrf.mxu0
  %222 = vmatprep.mubr.bf16.mxu0 0
  %223 = vmatmul.mubr.bf16.gmra.mxu0 %v137
  %v224 = vpop.f32.mrf.mxu0
  %v225 = vadd.f32 0.0, %v224
  %v226 = vpop.f32.mrf.mxu0
  %v227 = vpop.f32.mrf.mxu0
  %v228 = vadd.f32 0.0, %v227
  %v229 = vpop.f32.mrf.mxu0
  %230 = vmatprep.mubr.bf16.mxu0 0
  %231 = vmatmul.mubr.bf16.gmra.mxu0 %v140
  %v232 = vpop.f32.mrf.mxu0
  %v233 = vadd.f32 0.0, %v232
  %v234 = vpop.f32.mrf.mxu0
  %v235 = vpop.f32.mrf.mxu0
  %v236 = vadd.f32 0.0, %v235
  %v237 = vpop.f32.mrf.mxu0
  %238 = vdwg.mxu0
  %v255 = vunpack.c.l.b16 %v39
  %v256 = vunpack.c.l.b16 %v40
  %v257 = vunpack.c.l.b16 %v41
  %v258 = vunpack.c.l.b16 %v42
  %v259 = vunpack.c.l.b16 %v43
  %v260 = vunpack.c.l.b16 %v44
  %v261 = vunpack.c.l.b16 %v45
  %v262 = vunpack.c.l.b16 %v46
  %v263 = vunpack.c.l.b16 %v47
  %v264 = vunpack.c.l.b16 %v48
  %v265 = vunpack.c.l.b16 %v49
  %v266 = vunpack.c.l.b16 %v50
  %v267 = vunpack.c.l.b16 %v51
  %v268 = vunpack.c.l.b16 %v52
  %v269 = vunpack.c.l.b16 %v53
  %v270 = vunpack.c.l.b16 %v54
  %v271 = vpack.c.b16 %v256, %v255
  %v272 = vpack.c.b16 %v258, %v257
  %v273 = vpack.c.b16 %v260, %v259
  %v274 = vpack.c.b16 %v262, %v261
  %v275 = vpack.c.b16 %v264, %v263
  %v276 = vpack.c.b16 %v266, %v265
  %v277 = vpack.c.b16 %v268, %v267
  %v278 = vpack.c.b16 %v270, %v269
  %v282 = vunpack.c.l.b16 %v33
  %v283 = vunpack.c.l.b16 %v34
  %v284 = vunpack.c.l.b16 %v35
  %v285 = vpack.c.b16 %v283, %v282
  %v286 = vpack.c.b16 %v284, %v284
  %vm288 = vcmask 162816
  %v290 = vsel %vm288, %v271, 0
  %v293 = vsel %vm288, %v272, 0
  %v296 = vsel %vm288, %v273, 0
  %v299 = vsel %vm288, %v274, 0
  %v302 = vsel %vm288, %v275, 0
  %v305 = vsel %vm288, %v276, 0
  %v308 = vsel %vm288, %v277, 0
  %v311 = vsel %vm288, %v278, 0
  %vm313 = vcmask 1041408
  %v315 = vsel %vm313, %v286, 0
  %317 = vmatprep.subr.bf16.mxu0 0
  %318 = vmatpush1.bf16.msra.mxu0 0
  %319 = vmatprep.subr.bf16.mxu0 0
  %320 = vmatpush1.bf16.msra.mxu0 0
  %321 = vmatprep.subr.bf16.mxu0 0
  %322 = vmatpush1.bf16.msra.mxu0 0
  %323 = vmatprep.subr.bf16.mxu0 0
  %324 = vmatpush1.bf16.msra.mxu0 0
  %325 = vmatprep.subr.bf16.mxu0 0
  %326 = vmatpush1.bf16.msra.mxu0 0
  %327 = vmatprep.subr.bf16.mxu0 0
  %328 = vmatpush1.bf16.msra.mxu0 0
  %329 = vmatprep.subr.bf16.mxu0 0
  %330 = vmatpush1.bf16.msra.mxu0 %v315
  %331 = vmatprep.subr.bf16.mxu0 0
  %332 = vmatpush1.bf16.msra.mxu0 %v285
  %333 = vmatprep.subr.bf16.mxu0 0
  %334 = vmatpush2.bf16.msra.mxu0 0
  %335 = vmatprep.subr.bf16.mxu0 0
  %336 = vmatpush2.bf16.msra.mxu0 0
  %337 = vmatprep.subr.bf16.mxu0 0
  %338 = vmatpush2.bf16.msra.mxu0 0
  %339 = vmatprep.subr.bf16.mxu0 0
  %340 = vmatpush2.bf16.msra.mxu0 0
  %341 = vmatprep.subr.bf16.mxu0 0
  %342 = vmatpush2.bf16.msra.mxu0 0
  %343 = vmatprep.subr.bf16.mxu0 0
  %344 = vmatpush2.bf16.msra.mxu0 0
  %345 = vmatprep.subr.bf16.mxu0 0
  %346 = vmatpush2.bf16.msra.mxu0 0
  %347 = vmatprep.subr.bf16.mxu0 0
  %348 = vmatpush2.bf16.msra.mxu0 0
  %349 = vmatprep.mubr.bf16.mxu0 0
  %350 = vmatmul.mubr.bf16.gmra.mxu0 %v290
  %v351 = vpop.f32.mrf.mxu0
  %v352 = vadd.f32 %v177, %v351
  %v353 = vpop.f32.mrf.mxu0
  %v354 = vpop.f32.mrf.mxu0
  %v355 = vadd.f32 %v180, %v354
  %v356 = vpop.f32.mrf.mxu0
  %357 = vmatprep.mubr.bf16.mxu0 0
  %358 = vmatmul.mubr.bf16.gmra.mxu0 %v293
  %v359 = vpop.f32.mrf.mxu0
  %v360 = vadd.f32 %v185, %v359
  %v361 = vpop.f32.mrf.mxu0
  %v362 = vpop.f32.mrf.mxu0
  %v363 = vadd.f32 %v188, %v362
  %v364 = vpop.f32.mrf.mxu0
  %365 = vmatprep.mubr.bf16.mxu0 0
  %366 = vmatmul.mubr.bf16.gmra.mxu0 %v296
  %v367 = vpop.f32.mrf.mxu0
  %v368 = vadd.f32 %v193, %v367
  %v369 = vpop.f32.mrf.mxu0
  %v370 = vpop.f32.mrf.mxu0
  %v371 = vadd.f32 %v196, %v370
  %v372 = vpop.f32.mrf.mxu0
  %373 = vmatprep.mubr.bf16.mxu0 0
  %374 = vmatmul.mubr.bf16.gmra.mxu0 %v299
  %v375 = vpop.f32.mrf.mxu0
  %v376 = vadd.f32 %v201, %v375
  %v377 = vpop.f32.mrf.mxu0
  %v378 = vpop.f32.mrf.mxu0
  %v379 = vadd.f32 %v204, %v378
  %v380 = vpop.f32.mrf.mxu0
  %381 = vmatprep.mubr.bf16.mxu0 0
  %382 = vmatmul.mubr.bf16.gmra.mxu0 %v302
  %v383 = vpop.f32.mrf.mxu0
  %v384 = vadd.f32 %v209, %v383
  %v385 = vpop.f32.mrf.mxu0
  %v386 = vpop.f32.mrf.mxu0
  %v387 = vadd.f32 %v212, %v386
  %v388 = vpop.f32.mrf.mxu0
  %389 = vmatprep.mubr.bf16.mxu0 0
  %390 = vmatmul.mubr.bf16.gmra.mxu0 %v305
  %v391 = vpop.f32.mrf.mxu0
  %v392 = vadd.f32 %v217, %v391
  %v393 = vpop.f32.mrf.mxu0
  %v394 = vpop.f32.mrf.mxu0
  %v395 = vadd.f32 %v220, %v394
  %v396 = vpop.f32.mrf.mxu0
  %397 = vmatprep.mubr.bf16.mxu0 0
  %398 = vmatmul.mubr.bf16.gmra.mxu0 %v308
  %v399 = vpop.f32.mrf.mxu0
  %v400 = vadd.f32 %v225, %v399
  %v401 = vpop.f32.mrf.mxu0
  %v402 = vpop.f32.mrf.mxu0
  %v403 = vadd.f32 %v228, %v402
  %v404 = vpop.f32.mrf.mxu0
  %405 = vmatprep.mubr.bf16.mxu0 0
  %406 = vmatmul.mubr.bf16.gmra.mxu0 %v311
  %v407 = vpop.f32.mrf.mxu0
  %v408 = vadd.f32 %v233, %v407
  %v409 = vpop.f32.mrf.mxu0
  %v410 = vpop.f32.mrf.mxu0
  %v411 = vadd.f32 %v236, %v410
  %v412 = vpop.f32.mrf.mxu0
  %413 = vdwg.mxu0
  %v415 = vlaneseq
  %v416 = vshrl.u32 %v415, 7
  %v417 = vsub.s32 0, %v416
  %v418 = vrot.slane %v38, %v417
  %v420 = vadd.f32 %v352, %v418
  %v421 = vadd.f32 %v355, %v418
  %v422 = vadd.f32 %v360, %v418
  %v423 = vadd.f32 %v363, %v418
  %v424 = vadd.f32 %v368, %v418
  %v425 = vadd.f32 %v371, %v418
  %v426 = vadd.f32 %v376, %v418
  %v427 = vadd.f32 %v379, %v418
  %v428 = vadd.f32 %v384, %v418
  %v429 = vadd.f32 %v387, %v418
  %v430 = vadd.f32 %v392, %v418
  %v431 = vadd.f32 %v395, %v418
  %v432 = vadd.f32 %v400, %v418
  %v433 = vadd.f32 %v403, %v418
  %v434 = vadd.f32 %v408, %v418
  %v435 = vadd.f32 %v411, %v418
  %v436 = vmax.f32 %v420, 0.0
  %v437 = vmax.f32 %v421, 0.0
  %v438 = vmax.f32 %v422, 0.0
  %v439 = vmax.f32 %v423, 0.0
  %v440 = vmax.f32 %v424, 0.0
  %v441 = vmax.f32 %v425, 0.0
  %v442 = vmax.f32 %v426, 0.0
  %v443 = vmax.f32 %v427, 0.0
  %v444 = vmax.f32 %v428, 0.0
  %v445 = vmax.f32 %v429, 0.0
  %v446 = vmax.f32 %v430, 0.0
  %v447 = vmax.f32 %v431, 0.0
  %v448 = vmax.f32 %v432, 0.0
  %v449 = vmax.f32 %v433, 0.0
  %v450 = vmax.f32 %v434, 0.0
  %v451 = vmax.f32 %v435, 0.0
  %v452 = vld [vmem:[%s5] sm:$0xf]
  %v453 = vld [vmem:[%s5 + $0x4] sm:$0xf]
  %v454 = vld [vmem:[%s5 + $0x8] sm:$0xf]
  %v455 = vld [vmem:[%s5 + $0xc] sm:$0xf]
  %v456 = vld [vmem:[%s6] sm:$0x1]
  %v457 = vpack.c.bf16 %v437, %v436
  %v458 = vpack.c.bf16 %v439, %v438
  %v459 = vpack.c.bf16 %v441, %v440
  %v460 = vpack.c.bf16 %v443, %v442
  %v461 = vpack.c.bf16 %v445, %v444
  %v462 = vpack.c.bf16 %v447, %v446
  %v463 = vpack.c.bf16 %v449, %v448
  %v464 = vpack.c.bf16 %v451, %v450
  %v466 = vlaneseq
  %v467 = vshrl.u32 %v466, 7
  %v468 = vsub.s32 0, %v467
  %v469 = vrot.slane %v456, %v468
  %v475 = vunpack.c.l.b16 %v452
  %v476 = vunpack.c.l.b16 %v453
  %v477 = vunpack.c.l.b16 %v454
  %v478 = vunpack.c.l.b16 %v455
  %v479 = vpack.c.b16 %v476, %v475
  %v480 = vpack.c.b16 %v478, %v477
  %vm483 = vcmask 261120
  %v485 = vsel %vm483, %v457, 0
  %v488 = vsel %vm483, %v458, 0
  %v491 = vsel %vm483, %v459, 0
  %v494 = vsel %vm483, %v460, 0
  %v497 = vsel %vm483, %v461, 0
  %v500 = vsel %vm483, %v462, 0
  %v503 = vsel %vm483, %v463, 0
  %v506 = vsel %vm483, %v464, 0
  %508 = vmatprep.subr.bf16.mxu0 0
  %509 = vmatpush1.bf16.msra.mxu0 0
  %510 = vmatprep.subr.bf16.mxu0 0
  %511 = vmatpush1.bf16.msra.mxu0 0
  %512 = vmatprep.subr.bf16.mxu0 0
  %513 = vmatpush1.bf16.msra.mxu0 0
  %514 = vmatprep.subr.bf16.mxu0 0
  %515 = vmatpush1.bf16.msra.mxu0 0
  %516 = vmatprep.subr.bf16.mxu0 0
  %517 = vmatpush1.bf16.msra.mxu0 0
  %518 = vmatprep.subr.bf16.mxu0 0
  %519 = vmatpush1.bf16.msra.mxu0 0
  %520 = vmatprep.subr.bf16.mxu0 0
  %521 = vmatpush1.bf16.msra.mxu0 %v480
  %522 = vmatprep.subr.bf16.mxu0 0
  %523 = vmatpush1.bf16.msra.mxu0 %v479
  %524 = vmatprep.subr.bf16.mxu0 0
  %525 = vmatpush2.bf16.msra.mxu0 0
  %526 = vmatprep.subr.bf16.mxu0 0
  %527 = vmatpush2.bf16.msra.mxu0 0
  %528 = vmatprep.subr.bf16.mxu0 0
  %529 = vmatpush2.bf16.msra.mxu0 0
  %530 = vmatprep.subr.bf16.mxu0 0
  %531 = vmatpush2.bf16.msra.mxu0 0
  %532 = vmatprep.subr.bf16.mxu0 0
  %533 = vmatpush2.bf16.msra.mxu0 0
  %534 = vmatprep.subr.bf16.mxu0 0
  %535 = vmatpush2.bf16.msra.mxu0 0
  %536 = vmatprep.subr.bf16.mxu0 0
  %537 = vmatpush2.bf16.msra.mxu0 0
  %538 = vmatprep.subr.bf16.mxu0 0
  %539 = vmatpush2.bf16.msra.mxu0 0
  %540 = vmatprep.mubr.bf16.mxu0 0
  %541 = vmatmul.mubr.bf16.gmra.mxu0 %v485
  %v542 = vpop.f32.mrf.mxu0
  %v543 = vadd.f32 %v469, %v542
  %v544 = vpop.f32.mrf.mxu0
  %v545 = vpop.f32.mrf.mxu0
  %v546 = vadd.f32 %v469, %v545
  %v547 = vpop.f32.mrf.mxu0
  %548 = vmatprep.mubr.bf16.mxu0 0
  %549 = vmatmul.mubr.bf16.gmra.mxu0 %v488
  %v550 = vpop.f32.mrf.mxu0
  %v551 = vadd.f32 %v469, %v550
  %v552 = vpop.f32.mrf.mxu0
  %v553 = vpop.f32.mrf.mxu0
  %v554 = vadd.f32 %v469, %v553
  %v555 = vpop.f32.mrf.mxu0
  %556 = vmatprep.mubr.bf16.mxu0 0
  %557 = vmatmul.mubr.bf16.gmra.mxu0 %v491
  %v558 = vpop.f32.mrf.mxu0
  %v559 = vadd.f32 %v469, %v558
  %v560 = vpop.f32.mrf.mxu0
  %v561 = vpop.f32.mrf.mxu0
  %v562 = vadd.f32 %v469, %v561
  %v563 = vpop.f32.mrf.mxu0
  %564 = vmatprep.mubr.bf16.mxu0 0
  %565 = vmatmul.mubr.bf16.gmra.mxu0 %v494
  %v566 = vpop.f32.mrf.mxu0
  %v567 = vadd.f32 %v469, %v566
  %v568 = vpop.f32.mrf.mxu0
  %v569 = vpop.f32.mrf.mxu0
  %v570 = vadd.f32 %v469, %v569
  %v571 = vpop.f32.mrf.mxu0
  %572 = vmatprep.mubr.bf16.mxu0 0
  %573 = vmatmul.mubr.bf16.gmra.mxu0 %v497
  %v574 = vpop.f32.mrf.mxu0
  %v575 = vadd.f32 %v469, %v574
  %v576 = vpop.f32.mrf.mxu0
  %v577 = vpop.f32.mrf.mxu0
  %v578 = vadd.f32 %v469, %v577
  %v579 = vpop.f32.mrf.mxu0
  %580 = vmatprep.mubr.bf16.mxu0 0
  %581 = vmatmul.mubr.bf16.gmra.mxu0 %v500
  %v582 = vpop.f32.mrf.mxu0
  %v583 = vadd.f32 %v469, %v582
  %v584 = vpop.f32.mrf.mxu0
  %v585 = vpop.f32.mrf.mxu0
  %v586 = vadd.f32 %v469, %v585
  %v587 = vpop.f32.mrf.mxu0
  %588 = vmatprep.mubr.bf16.mxu0 0
  %589 = vmatmul.mubr.bf16.gmra.mxu0 %v503
  %v590 = vpop.f32.mrf.mxu0
  %v591 = vadd.f32 %v469, %v590
  %v592 = vpop.f32.mrf.mxu0
  %v593 = vpop.f32.mrf.mxu0
  %v594 = vadd.f32 %v469, %v593
  %v595 = vpop.f32.mrf.mxu0
  %596 = vmatprep.mubr.bf16.mxu0 0
  %597 = vmatmul.mubr.bf16.gmra.mxu0 %v506
  %v598 = vpop.f32.mrf.mxu0
  %v599 = vadd.f32 %v469, %v598
  %v600 = vpop.f32.mrf.mxu0
  %v601 = vpop.f32.mrf.mxu0
  %v602 = vadd.f32 %v469, %v601
  %v603 = vpop.f32.mrf.mxu0
  %604 = vdwg.mxu0
  %v605 = vmax.f32 %v543, 0.0
  %v606 = vmax.f32 %v546, 0.0
  %v607 = vmax.f32 %v551, 0.0
  %v608 = vmax.f32 %v554, 0.0
  %v609 = vmax.f32 %v559, 0.0
  %v610 = vmax.f32 %v562, 0.0
  %v611 = vmax.f32 %v567, 0.0
  %v612 = vmax.f32 %v570, 0.0
  %v613 = vmax.f32 %v575, 0.0
  %v614 = vmax.f32 %v578, 0.0
  %v615 = vmax.f32 %v583, 0.0
  %v616 = vmax.f32 %v586, 0.0
  %v617 = vmax.f32 %v591, 0.0
  %v618 = vmax.f32 %v594, 0.0
  %v619 = vmax.f32 %v599, 0.0
  %v620 = vmax.f32 %v602, 0.0
  %v621 = vld [vmem:[%s7] sm:$0xf]
  %v622 = vld [vmem:[%s7 + $0x4] sm:$0xf]
  %v623 = vld [vmem:[%s7 + $0x8] sm:$0xf]
  %v624 = vld [vmem:[%s7 + $0xc] sm:$0xf]
  %v625 = vld [vmem:[%s8] sm:$0x1]
  %v626 = vpack.c.bf16 %v606, %v605
  %v627 = vpack.c.bf16 %v608, %v607
  %v628 = vpack.c.bf16 %v610, %v609
  %v629 = vpack.c.bf16 %v612, %v611
  %v630 = vpack.c.bf16 %v614, %v613
  %v631 = vpack.c.bf16 %v616, %v615
  %v632 = vpack.c.bf16 %v618, %v617
  %v633 = vpack.c.bf16 %v620, %v619
  %v635 = vlaneseq
  %v636 = vshrl.u32 %v635, 7
  %v637 = vsub.s32 0, %v636
  %v638 = vrot.slane %v625, %v637
  %v644 = vunpack.c.l.b16 %v621
  %v645 = vunpack.c.l.b16 %v622
  %v646 = vunpack.c.l.b16 %v623
  %v647 = vunpack.c.l.b16 %v624
  %v648 = vpack.c.b16 %v645, %v644
  %v649 = vpack.c.b16 %v647, %v646
  %v653 = vsel %vm483, %v626, 0
  %v656 = vsel %vm483, %v627, 0
  %v659 = vsel %vm483, %v628, 0
  %v662 = vsel %vm483, %v629, 0
  %v665 = vsel %vm483, %v630, 0
  %v668 = vsel %vm483, %v631, 0
  %v671 = vsel %vm483, %v632, 0
  %v674 = vsel %vm483, %v633, 0
  %676 = vmatprep.subr.bf16.mxu0 0
  %677 = vmatpush1.bf16.msra.mxu0 0
  %678 = vmatprep.subr.bf16.mxu0 0
  %679 = vmatpush1.bf16.msra.mxu0 0
  %680 = vmatprep.subr.bf16.mxu0 0
  %681 = vmatpush1.bf16.msra.mxu0 0
  %682 = vmatprep.subr.bf16.mxu0 0
  %683 = vmatpush1.bf16.msra.mxu0 0
  %684 = vmatprep.subr.bf16.mxu0 0
  %685 = vmatpush1.bf16.msra.mxu0 0
  %686 = vmatprep.subr.bf16.mxu0 0
  %687 = vmatpush1.bf16.msra.mxu0 0
  %688 = vmatprep.subr.bf16.mxu0 0
  %689 = vmatpush1.bf16.msra.mxu0 %v649
  %690 = vmatprep.subr.bf16.mxu0 0
  %691 = vmatpush1.bf16.msra.mxu0 %v648
  %692 = vmatprep.subr.bf16.mxu0 0
  %693 = vmatpush2.bf16.msra.mxu0 0
  %694 = vmatprep.subr.bf16.mxu0 0
  %695 = vmatpush2.bf16.msra.mxu0 0
  %696 = vmatprep.subr.bf16.mxu0 0
  %697 = vmatpush2.bf16.msra.mxu0 0
  %698 = vmatprep.subr.bf16.mxu0 0
  %699 = vmatpush2.bf16.msra.mxu0 0
  %700 = vmatprep.subr.bf16.mxu0 0
  %701 = vmatpush2.bf16.msra.mxu0 0
  %702 = vmatprep.subr.bf16.mxu0 0
  %703 = vmatpush2.bf16.msra.mxu0 0
  %704 = vmatprep.subr.bf16.mxu0 0
  %705 = vmatpush2.bf16.msra.mxu0 0
  %706 = vmatprep.subr.bf16.mxu0 0
  %707 = vmatpush2.bf16.msra.mxu0 0
  %708 = vmatprep.mubr.bf16.mxu0 0
  %709 = vmatmul.mubr.bf16.gmra.mxu0 %v653
  %v710 = vpop.f32.mrf.mxu0
  %v711 = vadd.f32 %v638, %v710
  %v712 = vpop.f32.mrf.mxu0
  %v713 = vpop.f32.mrf.mxu0
  %v714 = vadd.f32 %v638, %v713
  %v715 = vpop.f32.mrf.mxu0
  %716 = vmatprep.mubr.bf16.mxu0 0
  %717 = vmatmul.mubr.bf16.gmra.mxu0 %v656
  %v718 = vpop.f32.mrf.mxu0
  %v719 = vadd.f32 %v638, %v718
  %v720 = vpop.f32.mrf.mxu0
  %v721 = vpop.f32.mrf.mxu0
  %v722 = vadd.f32 %v638, %v721
  %v723 = vpop.f32.mrf.mxu0
  %724 = vmatprep.mubr.bf16.mxu0 0
  %725 = vmatmul.mubr.bf16.gmra.mxu0 %v659
  %v726 = vpop.f32.mrf.mxu0
  %v727 = vadd.f32 %v638, %v726
  %v728 = vpop.f32.mrf.mxu0
  %v729 = vpop.f32.mrf.mxu0
  %v730 = vadd.f32 %v638, %v729
  %v731 = vpop.f32.mrf.mxu0
  %732 = vmatprep.mubr.bf16.mxu0 0
  %733 = vmatmul.mubr.bf16.gmra.mxu0 %v662
  %v734 = vpop.f32.mrf.mxu0
  %v735 = vadd.f32 %v638, %v734
  %v736 = vpop.f32.mrf.mxu0
  %v737 = vpop.f32.mrf.mxu0
  %v738 = vadd.f32 %v638, %v737
  %v739 = vpop.f32.mrf.mxu0
  %740 = vmatprep.mubr.bf16.mxu0 0
  %741 = vmatmul.mubr.bf16.gmra.mxu0 %v665
  %v742 = vpop.f32.mrf.mxu0
  %v743 = vadd.f32 %v638, %v742
  %v744 = vpop.f32.mrf.mxu0
  %v745 = vpop.f32.mrf.mxu0
  %v746 = vadd.f32 %v638, %v745
  %v747 = vpop.f32.mrf.mxu0
  %748 = vmatprep.mubr.bf16.mxu0 0
  %749 = vmatmul.mubr.bf16.gmra.mxu0 %v668
  %v750 = vpop.f32.mrf.mxu0
  %v751 = vadd.f32 %v638, %v750
  %v752 = vpop.f32.mrf.mxu0
  %v753 = vpop.f32.mrf.mxu0
  %v754 = vadd.f32 %v638, %v753
  %v755 = vpop.f32.mrf.mxu0
  %756 = vmatprep.mubr.bf16.mxu0 0
  %757 = vmatmul.mubr.bf16.gmra.mxu0 %v671
  %v758 = vpop.f32.mrf.mxu0
  %v759 = vadd.f32 %v638, %v758
  %v760 = vpop.f32.mrf.mxu0
  %v761 = vpop.f32.mrf.mxu0
  %v762 = vadd.f32 %v638, %v761
  %v763 = vpop.f32.mrf.mxu0
  %764 = vmatprep.mubr.bf16.mxu0 0
  %765 = vmatmul.mubr.bf16.gmra.mxu0 %v674
  %v766 = vpop.f32.mrf.mxu0
  %v767 = vadd.f32 %v638, %v766
  %v768 = vpop.f32.mrf.mxu0
  %v769 = vpop.f32.mrf.mxu0
  %v770 = vadd.f32 %v638, %v769
  %v771 = vpop.f32.mrf.mxu0
  %772 = vdwg.mxu0
  %vm773 = vcmask 31744
  %774 = vst.msk [vmem:[%s9] sm:$0xff] %vm773, %v711
  %775 = vst.msk [vmem:[%s9 + $0x8] sm:$0xff] %vm773, %v714
  %776 = vst.msk [vmem:[%s9 + $0x10] sm:$0xff] %vm773, %v719
  %777 = vst.msk [vmem:[%s9 + $0x18] sm:$0xff] %vm773, %v722
  %778 = vst.msk [vmem:[%s9 + $0x20] sm:$0xff] %vm773, %v727
  %779 = vst.msk [vmem:[%s9 + $0x28] sm:$0xff] %vm773, %v730
  %780 = vst.msk [vmem:[%s9 + $0x30] sm:$0xff] %vm773, %v735
  %781 = vst.msk [vmem:[%s9 + $0x38] sm:$0xff] %vm773, %v738
  %782 = vst.msk [vmem:[%s9 + $0x40] sm:$0xff] %vm773, %v743
  %783 = vst.msk [vmem:[%s9 + $0x48] sm:$0xff] %vm773, %v746
  %784 = vst.msk [vmem:[%s9 + $0x50] sm:$0xff] %vm773, %v751
  %785 = vst.msk [vmem:[%s9 + $0x58] sm:$0xff] %vm773, %v754
  %786 = vst.msk [vmem:[%s9 + $0x60] sm:$0xff] %vm773, %v759
  %787 = vst.msk [vmem:[%s9 + $0x68] sm:$0xff] %vm773, %v762
  %788 = vst.msk [vmem:[%s9 + $0x70] sm:$0xff] %vm773, %v767
  %789 = vst.msk [vmem:[%s9 + $0x78] sm:$0xff] %vm773, %v770
  // Predicated region
  $region38: #{_lambda_.1} parent=0 // pred_check
    _
  $region39: #{_lambda_.1} parent=0 // pred_check_branch
    %791 = sbr.rel (0) target = $region41
  $region40: #{_lambda_.1} parent=0 // pred_region
    _
  $region41: #{_lambda_.1} parent=0 // pred_fallthru
    _
  // Predicated region
  $region42: #{_lambda_.1} parent=0 // pred_check
    _
  $region43: #{_lambda_.1} parent=0 // pred_check_branch
    %793 = sbr.rel (0) target = $region45
  $region44: #{_lambda_.1} parent=0 // pred_region
    _
  $region45: #{_lambda_.1} parent=0 // pred_fallthru
    _

</llo_original>
